<compile_context>
chip_gen: v7x
topology: tpu7x:2x2x1
jax: 0.10.0
libtpu: 0.0.40
codegen_flags: <defaults>
</compile_context>

<pallas_src>
import jax
import jax.numpy as jnp
from jax.experimental import pallas as pl
from jax.experimental.pallas import tpu as pltpu
import numpy as np


def _round_up(a, b):
    return (a + b - 1) // b * b


def _choose_token_tile(T, max_tm=256):
    """Token tile: multiple of 8 (sublane), capped at max_tm. Returns (tm, T_pad)."""
    t8 = _round_up(T, 8)
    tm = min(max_tm, t8)
    return tm, _round_up(t8, tm)


def _choose_f_tile(F):
    """Expert-FFN tile: 128-lane multiple when possible; bounds the per-step weight
    block (H, tf)/(tf, H) and the (tm, tf) GELU intermediate (v7x 64 MiB VMEM)."""
    for tf in (512, 256, 128):
        if F % tf == 0:
            return tf
    return F  # F < 128 (toy shapes): single full-F chunk


# ---------------------------------------------------------------------------
# MoE expert kernel
#   grid = (token_tiles, E, F_tiles); (E, F) are reduction axes accumulating
#   into the resident f32 output tile.  flags_ref (SMEM, scalar prefetch) gates
#   the expert MLP per (token_tile, expert).
# ---------------------------------------------------------------------------
def _moe_kernel(flags_ref,                        # SMEM int32 (n_tiles * E,)
                x_ref, wd_ref,                    # (tm, H), (tm, E)
                w1_ref, b1_ref, w2_ref, b2_ref,   # (H, tf), (1, tf), (tf, H), (1, H)
                o_ref):                           # (tm, H) f32, resident across (e, f)
    i = pl.program_id(0)          # token tile          ("parallel")
    e = pl.program_id(1)          # expert              ("arbitrary" reduction)
    f = pl.program_id(2)          # expert-FFN chunk    ("arbitrary" reduction)
    n_e = pl.num_programs(1)

    # Output tile is resident across the (e, f) reduction axes: init once.
    @pl.when(jnp.logical_and(e == 0, f == 0))
    def _():
        o_ref[...] = jnp.zeros_like(o_ref)

    # Routing-aware skip: run the expert MLP only if at least one token in this
    # tile was routed to expert e.
    @pl.when(flags_ref[i * n_e + e] > 0)
    def _():
        # Per-token routing weight for expert e: select column e of the (tm, E)
        # block (lane-dense load, constant across e/f so only DMA'd once per tile).
        col = jax.lax.broadcasted_iota(jnp.int32, wd_ref.shape, 1)
        wd = jnp.sum(jnp.where(col == e, wd_ref[...], 0.0),
                     axis=1, keepdims=True)                          # (tm, 1) f32

        # MXU matmuls in the weight dtype (bf16 params => bf16 MXU, half the DMA);
        # bias / gating / accumulation stay f32.
        h = jnp.dot(x_ref[...].astype(w1_ref.dtype), w1_ref[...],
                    preferred_element_type=jnp.float32)              # (tm, tf)
        h = h + b1_ref[...].astype(jnp.float32)
        h = jax.nn.gelu(h, approximate=True)                         # tanh GELU -> EUP slot
        y = jnp.dot(h.astype(w2_ref.dtype), w2_ref[...],
                    preferred_element_type=jnp.float32)              # (tm, H)
        # Add the output bias exactly once per expert (first F chunk only).
        y = y + jnp.where(f == 0, 1.0, 0.0) * b2_ref[...].astype(jnp.float32)
        # Tokens of this tile not routed to e have wd == 0 -> contribute nothing.
        o_ref[...] += wd * y


def moe_experts(flags, x_p, wd_p, w1, b1, w2, b2, *, tm, tf):
    """flags: (n_tiles*E,) int32; x_p: (T_pad, H); wd_p: (T_pad, E) f32;
    w1: (E, H, F); b1: (E, 1, F); w2: (E, F, H); b2: (E, 1, H)."""
    T_pad, H = x_p.shape
    E, _, F = w1.shape
    n_tiles = T_pad // tm
    n_f = F // tf

    return pl.pallas_call(
        _moe_kernel,
        out_shape=jax.ShapeDtypeStruct((T_pad, H), jnp.float32),
        grid_spec=pltpu.PrefetchScalarGridSpec(
            num_scalar_prefetch=1,
            grid=(n_tiles, E, n_f),
            in_specs=[
                pl.BlockSpec((tm, H), lambda i, e, f, flg: (i, 0)),
                pl.BlockSpec((tm, E), lambda i, e, f, flg: (i, 0)),
                pl.BlockSpec((pl.Squeezed(), H, tf), lambda i, e, f, flg: (e, 0, f)),
                pl.BlockSpec((pl.Squeezed(), 1, tf), lambda i, e, f, flg: (e, 0, f)),
                pl.BlockSpec((pl.Squeezed(), tf, H), lambda i, e, f, flg: (e, f, 0)),
                pl.BlockSpec((pl.Squeezed(), 1, H), lambda i, e, f, flg: (e, 0, 0)),
            ],
            out_specs=pl.BlockSpec((tm, H), lambda i, e, f, flg: (i, 0)),
        ),
        compiler_params=pltpu.CompilerParams(
            dimension_semantics=("parallel", "arbitrary", "arbitrary"),
            vmem_limit_bytes=48 * 1024 * 1024,
        ),
    )(flags, x_p, wd_p, w1, b1, w2, b2)


# ---------------------------------------------------------------------------
# Full forward pass (glue: gate + top-k routing, token tiling/padding, flags)
# ---------------------------------------------------------------------------
def token_choice_moe(x, params, *, k, max_token_tile=256):
    B, L, H = x.shape
    T = B * L
    x_flat = x.reshape(T, H)
    E = params["wg"].shape[1]
    F = params["w1"].shape[2]

    # Gate + top-k routing in plain XLA (gating math kept in f32).  E << 128 lanes,
    # so a dedicated Pallas gate kernel would be almost entirely MXU/lane padding.
    S = jax.nn.sigmoid(jnp.dot(x_flat.astype(jnp.float32),
                               params["wg"].astype(jnp.float32)))       # (T, E)
    G, I = jax.lax.top_k(S, k)                                          # (T, k)
    onehot = jax.nn.one_hot(I, E, dtype=jnp.float32)                    # (T, k, E)
    wdense = (onehot * G[..., None]).sum(axis=1)                        # (T, E) gate weight if chosen else 0
    sel = onehot.sum(axis=1)                                            # (T, E) 0/1 routing mask

    # Token tiling + padding (padded rows have zero routing weight -> contribute 0).
    tm, T_pad = _choose_token_tile(T, max_token_tile)
    n_tiles = T_pad // tm
    pad = T_pad - T
    x_p = jnp.pad(x_flat, ((0, pad), (0, 0)))
    wd_p = jnp.pad(wdense, ((0, pad), (0, 0)))
    sel_p = jnp.pad(sel, ((0, pad), (0, 0)))

    # Per-(token_tile, expert) "any token routed" flag -> scalar prefetch (SMEM).
    flags = (sel_p.reshape(n_tiles, tm, E).max(axis=1) > 0).astype(jnp.int32)
    flags = flags.reshape(-1)                                           # (n_tiles * E,)

    tf = _choose_f_tile(F)
    out = moe_experts(flags, x_p, wd_p, params["w1"], params["b1"],
                      params["w2"], params["b2"], tm=tm, tf=tf)         # (T_pad, H) f32
    return out[:T].astype(x.dtype).reshape(B, L, H)


# ---------------------------------------------------------------------------
# Pure-JAX reference (dense formulation) for verification
# ---------------------------------------------------------------------------
def reference(x, params, *, k):
    B, L, H = x.shape
    xf = x.reshape(B * L, H).astype(jnp.float32)
    E = params["wg"].shape[1]
    S = jax.nn.sigmoid(xf @ params["wg"].astype(jnp.float32))
    G, I = jax.lax.top_k(S, k)
    wd = (jax.nn.one_hot(I, E, dtype=jnp.float32) * G[..., None]).sum(axis=1)
    out = jnp.zeros_like(xf)
    for e in range(E):
        h = jax.nn.gelu(xf @ params["w1"][e] + params["b1"][e, 0], approximate=True)
        y = h @ params["w2"][e] + params["b2"][e, 0]
        out = out + wd[:, e:e + 1] * y
    return out.astype(x.dtype).reshape(B, L, H)


if __name__ == "__main__":
    # Small shapes consistent with the module's forward; L=7 (T=14) deliberately
    # not a multiple of the token tile to exercise padding + per-tile flags.
    B, L, H = 2, 7, 32           # batch, seq_len, hidden_dim
    E, K, F = 4, 2, 64           # num_experts, top-k, expert ffn dim
    dtype = jnp.float32

    key = jax.random.PRNGKey(0)
    k_x, k_g, k_w1, k_b1, k_w2, k_b2 = jax.random.split(key, 6)

    x = jax.random.normal(k_x, (B, L, H), dtype=dtype)
    params = {
        "wg": jax.random.normal(k_g, (H, E), dtype=dtype) * (1.0 / np.sqrt(H)),
        "w1": jax.random.normal(k_w1, (E, H, F), dtype=dtype) * (1.0 / np.sqrt(H)),
        "b1": jax.random.normal(k_b1, (E, 1, F), dtype=dtype) * 0.01,
        "w2": jax.random.normal(k_w2, (E, F, H), dtype=dtype) * (1.0 / np.sqrt(F)),
        "b2": jax.random.normal(k_b2, (E, 1, H), dtype=dtype) * 0.01,
    }

    # token tile of 8 -> 2 token tiles + 2 padded rows on this toy size.
    out = jax.block_until_ready(token_choice_moe(x, params, k=K, max_token_tile=8))
    ref = jax.block_until_ready(reference(x, params, k=K))

    assert out.shape == (B, L, H)
    np.testing.assert_allclose(np.asarray(out), np.asarray(ref), rtol=1e-5, atol=1e-5)
    print("KERNEL_OK")
</pallas_src>

<mosaic_0001>
module attributes {stable_mosaic.version = 11 : i64} {
  func.func @_moe_kernel(%arg0: i32, %arg1: i32, %arg2: i32, %arg3: memref<8xi32, #tpu.memory_space<smem>>, %arg4: memref<8x32xf32, #tpu.memory_space<vmem>>, %arg5: memref<8x4xf32, #tpu.memory_space<vmem>>, %arg6: memref<1x32x64xf32, #tpu.memory_space<vmem>>, %arg7: memref<1x1x64xf32, #tpu.memory_space<vmem>>, %arg8: memref<1x64x32xf32, #tpu.memory_space<vmem>>, %arg9: memref<1x1x32xf32, #tpu.memory_space<vmem>>, %arg10: memref<8x32xf32, #tpu.memory_space<vmem>>) attributes {dimension_semantics = [#tpu.dimension_semantics<parallel>, #tpu.dimension_semantics<arbitrary>, #tpu.dimension_semantics<arbitrary>], iteration_bounds = array<i64: 2, 4, 1>, scalar_prefetch = 1 : i64, scratch_operands = 0 : i64, tpu.core_type = #tpu.core_type<tc>, window_params = [{transform_indices = @transform_0, window_bounds = array<i64: 8, 32>}, {transform_indices = @transform_1, window_bounds = array<i64: 8, 4>}, {transform_indices = @transform_2, window_bounds = array<i64: 1, 32, 64>}, {transform_indices = @transform_3, window_bounds = array<i64: 1, 1, 64>}, {transform_indices = @transform_4, window_bounds = array<i64: 1, 64, 32>}, {transform_indices = @transform_5, window_bounds = array<i64: 1, 1, 32>}, {transform_indices = @transform_6, window_bounds = array<i64: 8, 32>}]} {
    %c0_i32 = arith.constant 0 : i32
    %0 = arith.cmpi eq, %arg1, %c0_i32 : i32
    %c0_i32_0 = arith.constant 0 : i32
    %1 = arith.cmpi eq, %arg2, %c0_i32_0 : i32
    %2 = arith.andi %0, %1 : i1
    %3 = arith.extui %2 : i1 to i32
    %c0_i32_1 = arith.constant 0 : i32
    %4 = arith.cmpi ne, %3, %c0_i32_1 : i32
    scf.if %4 {
      %cst = arith.constant 0.000000e+00 : f32
      %12 = vector.broadcast %cst : f32 to vector<8x32xf32>
      %c0 = arith.constant 0 : index
      %c0_4 = arith.constant 0 : index
      %13 = vector.load %arg10[%c0, %c0_4] : memref<8x32xf32, #tpu.memory_space<vmem>>, vector<8x32xf32>
      tpu.vector_store %arg10[%c0, %c0_4], %12 {strides = array<i32>} : memref<8x32xf32, #tpu.memory_space<vmem>>, vector<8x32xf32>,
    } else {
    }
    %c4_i32 = arith.constant 4 : i32
    %5 = arith.muli %arg0, %c4_i32 : i32
    %6 = arith.addi %5, %arg1 : i32
    %7 = arith.index_cast %6 : i32 to index
    %8 = memref.load %arg3[%7] : memref<8xi32, #tpu.memory_space<smem>>
    %c0_i32_2 = arith.constant 0 : i32
    %9 = arith.cmpi sgt, %8, %c0_i32_2 : i32
    %10 = arith.extui %9 : i1 to i32
    %c0_i32_3 = arith.constant 0 : i32
    %11 = arith.cmpi ne, %10, %c0_i32_3 : i32
    scf.if %11 {
      %12 = tpu.iota {dimensions = array<i32: 1>} : vector<8x4xi32>
      %13 = vector.broadcast %arg1 : i32 to vector<8x4xi32>
      %14 = arith.cmpi eq, %12, %13 : vector<8x4xi32>
      %c0 = arith.constant 0 : index
      %c0_4 = arith.constant 0 : index
      %15 = vector.load %arg5[%c0, %c0_4] : memref<8x4xf32, #tpu.memory_space<vmem>>, vector<8x4xf32>
      %cst = arith.constant 0.000000e+00 : f32
      %16 = vector.broadcast %cst : f32 to vector<8x4xf32>
      %17 = arith.select %14, %15, %16 : vector<8x4xi1>, vector<8x4xf32>
      %cst_5 = arith.constant dense<0.000000e+00> : vector<8xf32>
      %18 = vector.multi_reduction <add>, %17, %cst_5 [1] : vector<8x4xf32> to vector<8xf32>
      %19 = vector.shape_cast %18 : vector<8xf32> to vector<8x1xf32>
      %c0_6 = arith.constant 0 : index
      %c0_7 = arith.constant 0 : index
      %20 = vector.load %arg4[%c0_6, %c0_7] : memref<8x32xf32, #tpu.memory_space<vmem>>, vector<8x32xf32>
      %c0_8 = arith.constant 0 : index
      %c0_9 = arith.constant 0 : index
      %c0_10 = arith.constant 0 : index
      %21 = vector.load %arg6[%c0_8, %c0_9, %c0_10] : memref<1x32x64xf32, #tpu.memory_space<vmem>>, vector<1x32x64xf32>
      %22 = vector.shape_cast %21 : vector<1x32x64xf32> to vector<32x64xf32>
      %cst_11 = arith.constant dense<0.000000e+00> : vector<8x64xf32>
      %23 = tpu.matmul %20, %22, %cst_11 {dimension_numbers = #tpu.dot_dimension_numbers<[1], [0], [0], [1], [0, 0, 1, 1], [], []>} : vector<8x32xf32>, vector<32x64xf32>, vector<8x64xf32> -> vector<8x64xf32>
      %c0_12 = arith.constant 0 : index
      %c0_13 = arith.constant 0 : index
      %c0_14 = arith.constant 0 : index
      %24 = vector.load %arg7[%c0_12, %c0_13, %c0_14] : memref<1x1x64xf32, #tpu.memory_space<vmem>>, vector<1x1x64xf32>
      %25 = vector.shape_cast %24 : vector<1x1x64xf32> to vector<1x64xf32>
      %26 = vector.broadcast %25 : vector<1x64xf32> to vector<8x64xf32>
      %27 = arith.addf %23, %26 : vector<8x64xf32>
      %28 = arith.mulf %27, %27 : vector<8x64xf32>
      %29 = arith.mulf %27, %28 : vector<8x64xf32>
      %cst_15 = arith.constant 4.471500e-02 : f32
      %30 = vector.broadcast %cst_15 : f32 to vector<8x64xf32>
      %31 = arith.mulf %30, %29 : vector<8x64xf32>
      %32 = arith.addf %27, %31 : vector<8x64xf32>
      %cst_16 = arith.constant 0.797884583 : f32
      %33 = vector.broadcast %cst_16 : f32 to vector<8x64xf32>
      %34 = arith.mulf %33, %32 : vector<8x64xf32>
      %35 = math.tanh %34 : vector<8x64xf32>
      %cst_17 = arith.constant 1.000000e+00 : f32
      %36 = vector.broadcast %cst_17 : f32 to vector<8x64xf32>
      %37 = arith.addf %36, %35 : vector<8x64xf32>
      %cst_18 = arith.constant 5.000000e-01 : f32
      %38 = vector.broadcast %cst_18 : f32 to vector<8x64xf32>
      %39 = arith.mulf %38, %37 : vector<8x64xf32>
      %40 = arith.mulf %27, %39 : vector<8x64xf32>
      %c0_19 = arith.constant 0 : index
      %c0_20 = arith.constant 0 : index
      %c0_21 = arith.constant 0 : index
      %41 = vector.load %arg8[%c0_19, %c0_20, %c0_21] : memref<1x64x32xf32, #tpu.memory_space<vmem>>, vector<1x64x32xf32>
      %42 = vector.shape_cast %41 : vector<1x64x32xf32> to vector<64x32xf32>
      %cst_22 = arith.constant dense<0.000000e+00> : vector<8x32xf32>
      %43 = tpu.matmul %40, %42, %cst_22 {dimension_numbers = #tpu.dot_dimension_numbers<[1], [0], [0], [1], [0, 0, 1, 1], [], []>} : vector<8x64xf32>, vector<64x32xf32>, vector<8x32xf32> -> vector<8x32xf32>
      %c0_i32_23 = arith.constant 0 : i32
      %44 = arith.cmpi eq, %arg2, %c0_i32_23 : i32
      %cst_24 = arith.constant 1.000000e+00 : f32
      %cst_25 = arith.constant 0.000000e+00 : f32
      %45 = arith.select %44, %cst_24, %cst_25 : f32
      %c0_26 = arith.constant 0 : index
      %c0_27 = arith.constant 0 : index
      %c0_28 = arith.constant 0 : index
      %46 = vector.load %arg9[%c0_26, %c0_27, %c0_28] : memref<1x1x32xf32, #tpu.memory_space<vmem>>, vector<1x1x32xf32>
      %47 = vector.shape_cast %46 : vector<1x1x32xf32> to vector<1x32xf32>
      %48 = vector.broadcast %45 : f32 to vector<1x32xf32>
      %49 = arith.mulf %48, %47 : vector<1x32xf32>
      %50 = vector.broadcast %49 : vector<1x32xf32> to vector<8x32xf32>
      %51 = arith.addf %43, %50 : vector<8x32xf32>
      %c0_29 = arith.constant 0 : index
      %c0_30 = arith.constant 0 : index
      %52 = vector.load %arg10[%c0_29, %c0_30] : memref<8x32xf32, #tpu.memory_space<vmem>>, vector<8x32xf32>
      %53 = vector.broadcast %19 : vector<8x1xf32> to vector<8x32xf32>
      %54 = arith.mulf %53, %51 : vector<8x32xf32>
      %55 = arith.addf %52, %54 : vector<8x32xf32>
      %c0_31 = arith.constant 0 : index
      %c0_32 = arith.constant 0 : index
      %56 = vector.load %arg10[%c0_31, %c0_32] : memref<8x32xf32, #tpu.memory_space<vmem>>, vector<8x32xf32>
      tpu.vector_store %arg10[%c0_31, %c0_32], %55 {strides = array<i32>} : memref<8x32xf32, #tpu.memory_space<vmem>>, vector<8x32xf32>,
    } else {
    }
    return
  }
  func.func @transform_0(%arg0: i32, %arg1: i32, %arg2: i32, %arg3: memref<8xi32, #tpu.memory_space<smem>>) -> (i32, i32) {
    %c0_i32 = arith.constant 0 : i32
    %c0_i32_0 = arith.constant 0 : i32
    return %arg0, %c0_i32 : i32, i32
  }
  func.func @transform_1(%arg0: i32, %arg1: i32, %arg2: i32, %arg3: memref<8xi32, #tpu.memory_space<smem>>) -> (i32, i32) {
    %c0_i32 = arith.constant 0 : i32
    %c0_i32_0 = arith.constant 0 : i32
    return %arg0, %c0_i32 : i32, i32
  }
  func.func @transform_2(%arg0: i32, %arg1: i32, %arg2: i32, %arg3: memref<8xi32, #tpu.memory_space<smem>>) -> (i32, i32, i32) {
    %c0_i32 = arith.constant 0 : i32
    %c0_i32_0 = arith.constant 0 : i32
    return %arg1, %c0_i32, %arg2 : i32, i32, i32
  }
  func.func @transform_3(%arg0: i32, %arg1: i32, %arg2: i32, %arg3: memref<8xi32, #tpu.memory_space<smem>>) -> (i32, i32, i32) {
    %c0_i32 = arith.constant 0 : i32
    %c0_i32_0 = arith.constant 0 : i32
    return %arg1, %c0_i32, %arg2 : i32, i32, i32
  }
  func.func @transform_4(%arg0: i32, %arg1: i32, %arg2: i32, %arg3: memref<8xi32, #tpu.memory_space<smem>>) -> (i32, i32, i32) {
    %c0_i32 = arith.constant 0 : i32
    %c0_i32_0 = arith.constant 0 : i32
    return %arg1, %arg2, %c0_i32 : i32, i32, i32
  }
  func.func @transform_5(%arg0: i32, %arg1: i32, %arg2: i32, %arg3: memref<8xi32, #tpu.memory_space<smem>>) -> (i32, i32, i32) {
    %c0_i32 = arith.constant 0 : i32
    %c0_i32_0 = arith.constant 0 : i32
    %c0_i32_1 = arith.constant 0 : i32
    return %arg1, %c0_i32, %c0_i32_0 : i32, i32, i32
  }
  func.func @transform_6(%arg0: i32, %arg1: i32, %arg2: i32, %arg3: memref<8xi32, #tpu.memory_space<smem>>) -> (i32, i32) {
    %c0_i32 = arith.constant 0 : i32
    %c0_i32_0 = arith.constant 0 : i32
    return %arg0, %c0_i32 : i32, i32
  }
}

</mosaic_0001>

<llo_original>
// kernel: tpu_custom_call.1
$region0: #{tpu_custom_call.1}
  #allocation0 [shape = 'u32[]', space=smem, size = 0x4, offset = 0x4, fixed_abs, tag = 'smem constant byte address 0x4 - core index']
  #allocation1 [shape = 'u32[144,128]{1,0:T(1,128)}', space=vmem, size = 0x12000, scoped, tag = 'internal scratch']
  #allocation2 [shape = 's32[1]{0}', space=sflag, size = 0x4, scoped, tag = 'scoped memory for tpu_custom_call.1']
  #allocation3 [shape = 'u8[512]{0}', space=smem, size = 0x200, scoped, tag = 'prefetched SMEM operand 0']
  %s0 = inlined_call_operand.vmem [shape: s32[8], index: 0, kind: input, shape index: {}]
  %s1 = inlined_call_operand.vmem [shape: f32[16,32], index: 1, kind: input, shape index: {}]
  %s2 = inlined_call_operand.vmem [shape: f32[16,4], index: 2, kind: input, shape index: {}]
  %s3 = inlined_call_operand.vmem [shape: f32[4,32,64], index: 3, kind: input, shape index: {}]
  %s4 = inlined_call_operand.vmem [shape: f32[4,1,64], index: 4, kind: input, shape index: {}]
  %s5 = inlined_call_operand.vmem [shape: f32[4,64,32], index: 5, kind: input, shape index: {}]
  %s6 = inlined_call_operand.vmem [shape: f32[4,1,32], index: 6, kind: input, shape index: {}]
  %s7 = inlined_call_operand.hbm [shape: f32[16,32], index: 7, kind: output, shape index: {}]
  %s8 = sld [smem:[#allocation0]]
  $region65: #{tpu_custom_call.1} parent=0
    _
  %s10 = ssub.s32 1, %s8
  %s11 = scalar_select 0, %s10, %s8
  %s12 = sshll.u32 %s0, 4
  %s13 = int_to_ptr.vmem [resolvable:$true] %s12
  %15 = dma.vmem_to_smem %s13, 16, [#allocation3], [#allocation2]
  %16 = dma.done [#allocation2], 16
  %17 = sfence
  $region1: #{tpu_custom_call.1} parent=0
    #allocation4 [shape = 'u8[8192]{0}', space=vmem, size = 0x2000, scoped, tag = 'output window, operand 0']
    #allocation5 [shape = 's32[2]{0}', space=sflag, size = 0x8, scoped, tag = 'scoped memory for tpu_custom_call.1']
    %18 = vsyncpa [#allocation5], 0
    %s19 = scalar_lea.sflag [#allocation5], 1
    %20 = vsyncpa %s19, 0
    loop: start=0, step=1, limit=10
    $region2: #{tpu_custom_call.1} parent=1 // loop_pre_header
      _
    $region3: #{tpu_custom_call.1} parent=1 // loop_header
      %s22 = sphi 0, %s26
      %p23 = scmp.ge.s32.totalorder %s22, 10
      %s29 = sphi 0, %s48
      %s30 = sphi 0, %s44
      %s31 = sphi 0, %s40
      %s32 = sphi 0, %s29
      %s33 = sphi 0, %s30
      %s34 = sphi 0, %s31
      %s35 = sphi 0, %s32
      %s36 = sphi 0, %s33
      %s37 = sphi 0, %s34
      %s51 = sphi 0, %s53
      %s54 = sphi 0, %s51
      %s55 = sphi 0, %s54
      %s71 = sphi 0, %s55
      %s77 = sphi 0, %s79
      %s80 = sphi 0, %s77
      %s81 = sphi 0, %s80
      %s97 = sphi 0, %s81
      %s105 = sphi 0, %s107
      %s108 = sphi 0, %s105
      %s109 = sphi 0, %s108
      %s125 = sphi 0, %s109
      %s133 = sphi 0, %s135
      %s136 = sphi 0, %s133
      %s137 = sphi 0, %s136
      %s153 = sphi 0, %s137
      %s161 = sphi 0, %s163
      %s164 = sphi 0, %s161
      %s165 = sphi 0, %s164
      %s181 = sphi 0, %s165
      %s187 = sphi 0, %s189
      %s190 = sphi 0, %s187
      %s191 = sphi 0, %s190
      %s207 = sphi 0, %s191
      %s213 = sphi 0, %s215
      %s216 = sphi 0, %s213
      %s217 = sphi 0, %s216
      %s233 = sphi 0, %s217
    $region4: #{tpu_custom_call.1} parent=1 // loop_header_branch
      %25 = sbr.rel (%p23) target = $region8
    $region5: #{tpu_custom_call.1} parent=1 // loop_body
      %s27 = ssub.s32 %s22, 1
      %s28 = ssub.s32 %s22, 2
      %s38 = sadd.s32 1, %s31
      %p39 = scmp.ge.s32.totalorder %s38, 1
      %s40 = scalar_select %p39, 0, %s38
      %s41 = sadd.s32 1, %s30
      %s42 = scalar_select %p39, %s41, %s30
      %p43 = scmp.ge.s32.totalorder %s42, 4
      %s44 = scalar_select %p43, 0, %s42
      %s45 = sadd.s32 1, %s29
      %s46 = scalar_select %p43, %s45, %s29
      %p47 = scmp.ge.s32.totalorder %s46, 2
      %s48 = scalar_select %p47, 0, %s46
      %s49 = ssub.s32 %s29, %s48
      %p50 = scmp.eq.s32.totalorder %s49, 0
      %s52 = sadd.s32 %s51, 1
      %s53 = scalar_select %p50, %s51, %s52
      %p56 = pneg %p50
      %p57 = scmp.eq.s32.totalorder %s22, 7
      %p58 = por %p56, %p57
      %p59 = scmp.ne.s32.totalorder %s51, %s54
      %p60 = scmp.eq.s32.totalorder %s22, 0
      %p61 = por %p59, %p60
      %p62 = scmp.ne.s32.totalorder %s51, %s54
      %p63 = scmp.eq.s32.totalorder %s27, 7
      %p64 = por %p62, %p63
      %p65 = scmp.ne.s32.totalorder %s54, %s55
      %p66 = scmp.eq.s32.totalorder %s27, 0
      %p67 = por %p65, %p66
      %p68 = scmp.ne.s32.totalorder %s54, %s55
      %p69 = scmp.eq.s32.totalorder %s28, 7
      %p70 = por %p68, %p69
      %p72 = scmp.ne.s32.totalorder %s55, %s71
      %p73 = scmp.eq.s32.totalorder %s28, 0
      %p74 = por %p72, %p73
      %s75 = ssub.s32 %s29, %s48
      %p76 = scmp.eq.s32.totalorder %s75, 0
      %s78 = sadd.s32 %s77, 1
      %s79 = scalar_select %p76, %s77, %s78
      %p82 = pneg %p76
      %p83 = scmp.eq.s32.totalorder %s22, 7
      %p84 = por %p82, %p83
      %p85 = scmp.ne.s32.totalorder %s77, %s80
      %p86 = scmp.eq.s32.totalorder %s22, 0
      %p87 = por %p85, %p86
      %p88 = scmp.ne.s32.totalorder %s77, %s80
      %p89 = scmp.eq.s32.totalorder %s27, 7
      %p90 = por %p88, %p89
      %p91 = scmp.ne.s32.totalorder %s80, %s81
      %p92 = scmp.eq.s32.totalorder %s27, 0
      %p93 = por %p91, %p92
      %p94 = scmp.ne.s32.totalorder %s80, %s81
      %p95 = scmp.eq.s32.totalorder %s28, 7
      %p96 = por %p94, %p95
      %p98 = scmp.ne.s32.totalorder %s81, %s97
      %p99 = scmp.eq.s32.totalorder %s28, 0
      %p100 = por %p98, %p99
      %s101 = ssub.s32 %s30, %s44
      %s102 = ssub.s32 %s31, %s40
      %s103 = sor.u32 %s101, %s102
      %p104 = scmp.eq.s32.totalorder %s103, 0
      %s106 = sadd.s32 %s105, 1
      %s107 = scalar_select %p104, %s105, %s106
      %p110 = pneg %p104
      %p111 = scmp.eq.s32.totalorder %s22, 7
      %p112 = por %p110, %p111
      %p113 = scmp.ne.s32.totalorder %s105, %s108
      %p114 = scmp.eq.s32.totalorder %s22, 0
      %p115 = por %p113, %p114
      %p116 = scmp.ne.s32.totalorder %s105, %s108
      %p117 = scmp.eq.s32.totalorder %s27, 7
      %p118 = por %p116, %p117
      %p119 = scmp.ne.s32.totalorder %s108, %s109
      %p120 = scmp.eq.s32.totalorder %s27, 0
      %p121 = por %p119, %p120
      %p122 = scmp.ne.s32.totalorder %s108, %s109
      %p123 = scmp.eq.s32.totalorder %s28, 7
      %p124 = por %p122, %p123
      %p126 = scmp.ne.s32.totalorder %s109, %s125
      %p127 = scmp.eq.s32.totalorder %s28, 0
      %p128 = por %p126, %p127
      %s129 = ssub.s32 %s30, %s44
      %s130 = ssub.s32 %s31, %s40
      %s131 = sor.u32 %s129, %s130
      %p132 = scmp.eq.s32.totalorder %s131, 0
      %s134 = sadd.s32 %s133, 1
      %s135 = scalar_select %p132, %s133, %s134
      %p138 = pneg %p132
      %p139 = scmp.eq.s32.totalorder %s22, 7
      %p140 = por %p138, %p139
      %p141 = scmp.ne.s32.totalorder %s133, %s136
      %p142 = scmp.eq.s32.totalorder %s22, 0
      %p143 = por %p141, %p142
      %p144 = scmp.ne.s32.totalorder %s133, %s136
      %p145 = scmp.eq.s32.totalorder %s27, 7
      %p146 = por %p144, %p145
      %p147 = scmp.ne.s32.totalorder %s136, %s137
      %p148 = scmp.eq.s32.totalorder %s27, 0
      %p149 = por %p147, %p148
      %p150 = scmp.ne.s32.totalorder %s136, %s137
      %p151 = scmp.eq.s32.totalorder %s28, 7
      %p152 = por %p150, %p151
      %p154 = scmp.ne.s32.totalorder %s137, %s153
      %p155 = scmp.eq.s32.totalorder %s28, 0
      %p156 = por %p154, %p155
      %s157 = ssub.s32 %s30, %s44
      %s158 = ssub.s32 %s31, %s40
      %s159 = sor.u32 %s157, %s158
      %p160 = scmp.eq.s32.totalorder %s159, 0
      %s162 = sadd.s32 %s161, 1
      %s163 = scalar_select %p160, %s161, %s162
      %p166 = pneg %p160
      %p167 = scmp.eq.s32.totalorder %s22, 7
      %p168 = por %p166, %p167
      %p169 = scmp.ne.s32.totalorder %s161, %s164
      %p170 = scmp.eq.s32.totalorder %s22, 0
      %p171 = por %p169, %p170
      %p172 = scmp.ne.s32.totalorder %s161, %s164
      %p173 = scmp.eq.s32.totalorder %s27, 7
      %p174 = por %p172, %p173
      %p175 = scmp.ne.s32.totalorder %s164, %s165
      %p176 = scmp.eq.s32.totalorder %s27, 0
      %p177 = por %p175, %p176
      %p178 = scmp.ne.s32.totalorder %s164, %s165
      %p179 = scmp.eq.s32.totalorder %s28, 7
      %p180 = por %p178, %p179
      %p182 = scmp.ne.s32.totalorder %s165, %s181
      %p183 = scmp.eq.s32.totalorder %s28, 0
      %p184 = por %p182, %p183
      %s185 = ssub.s32 %s30, %s44
      %p186 = scmp.eq.s32.totalorder %s185, 0
      %s188 = sadd.s32 %s187, 1
      %s189 = scalar_select %p186, %s187, %s188
      %p192 = pneg %p186
      %p193 = scmp.eq.s32.totalorder %s22, 7
      %p194 = por %p192, %p193
      %p195 = scmp.ne.s32.totalorder %s187, %s190
      %p196 = scmp.eq.s32.totalorder %s22, 0
      %p197 = por %p195, %p196
      %p198 = scmp.ne.s32.totalorder %s187, %s190
      %p199 = scmp.eq.s32.totalorder %s27, 7
      %p200 = por %p198, %p199
      %p201 = scmp.ne.s32.totalorder %s190, %s191
      %p202 = scmp.eq.s32.totalorder %s27, 0
      %p203 = por %p201, %p202
      %p204 = scmp.ne.s32.totalorder %s190, %s191
      %p205 = scmp.eq.s32.totalorder %s28, 7
      %p206 = por %p204, %p205
      %p208 = scmp.ne.s32.totalorder %s191, %s207
      %p209 = scmp.eq.s32.totalorder %s28, 0
      %p210 = por %p208, %p209
      %s211 = ssub.s32 %s29, %s48
      %p212 = scmp.eq.s32.totalorder %s211, 0
      %s214 = sadd.s32 %s213, 1
      %s215 = scalar_select %p212, %s213, %s214
      %p218 = pneg %p212
      %p219 = scmp.eq.s32.totalorder %s22, 7
      %p220 = por %p218, %p219
      %p221 = scmp.ne.s32.totalorder %s213, %s216
      %p222 = scmp.eq.s32.totalorder %s22, 0
      %p223 = por %p221, %p222
      %p224 = scmp.ne.s32.totalorder %s213, %s216
      %p225 = scmp.eq.s32.totalorder %s27, 7
      %p226 = por %p224, %p225
      %p227 = scmp.ne.s32.totalorder %s216, %s217
      %p228 = scmp.eq.s32.totalorder %s27, 0
      %p229 = por %p227, %p228
      %p230 = scmp.ne.s32.totalorder %s216, %s217
      %p231 = scmp.eq.s32.totalorder %s28, 7
      %p232 = por %p230, %p231
      %p234 = scmp.ne.s32.totalorder %s217, %s233
      %p235 = scmp.eq.s32.totalorder %s28, 0
      %p236 = por %p234, %p235
      %p237 = scmp.le.s32.totalorder 1, %s22
      %p238 = scmp.lt.s32.totalorder %s22, 9
      %p239 = pnand %p237, %p238
      %p240 = pneg %p239
      // Predicated region
      $region9: #{tpu_custom_call.1} parent=5 // pred_check
        _
      $region10: #{tpu_custom_call.1} parent=5 // pred_check_branch
        %242 = sbr.rel (%p239) target = $region12
      $region11: #{tpu_custom_call.1} parent=5 // pred_region
        %s243 = ssub.s32 %s22, 1
      $region12: #{tpu_custom_call.1} parent=5 // pred_fallthru
        _
      %p244 = scmp.lt.s32.totalorder %s22, 8
      // Predicated region
      $region13: #{tpu_custom_call.1} parent=5 // pred_check
        %p245 = pneg %p244
      $region14: #{tpu_custom_call.1} parent=5 // pred_check_branch
        %247 = sbr.rel (%p245) target = $region16
      $region15: #{tpu_custom_call.1} parent=5 // pred_region
        // Predicated region
        $region17: #{tpu_custom_call.1} parent=15 // pred_check
          %p248 = pneg %p61
        $region18: #{tpu_custom_call.1} parent=15 // pred_check_branch
          %250 = sbr.rel (%p248) target = $region20
        $region19: #{tpu_custom_call.1} parent=15 // pred_region
          %p251 = scmp.lt.s32.totalorder %s29, 1
          %s252 = scalar_select %p251, %s29, 1
          %s253 = smul.addr %s252, 8
          %s254 = scalar_lea.vmem %s1, %s253
        $region20: #{tpu_custom_call.1} parent=15 // pred_fallthru
          _
        // Predicated region
        $region21: #{tpu_custom_call.1} parent=15 // pred_check
          %p255 = pneg %p87
        $region22: #{tpu_custom_call.1} parent=15 // pred_check_branch
          %257 = sbr.rel (%p255) target = $region24
        $region23: #{tpu_custom_call.1} parent=15 // pred_region
          %p258 = scmp.lt.s32.totalorder %s29, 1
          %s259 = scalar_select %p258, %s29, 1
          %s260 = smul.addr %s259, 8
          %s261 = scalar_lea.vmem %s2, %s260
        $region24: #{tpu_custom_call.1} parent=15 // pred_fallthru
          _
        // Predicated region
        $region25: #{tpu_custom_call.1} parent=15 // pred_check
          %p262 = pneg %p115
        $region26: #{tpu_custom_call.1} parent=15 // pred_check_branch
          %264 = sbr.rel (%p262) target = $region28
        $region27: #{tpu_custom_call.1} parent=15 // pred_region
          %p265 = scmp.lt.s32.totalorder %s30, 3
          %s266 = scalar_select %p265, %s30, 3
          %p267 = scmp.lt.s32.totalorder %s31, 0
          %s268 = scalar_select %p267, %s31, 0
          %s269 = smul.addr %s266, 4
          %s270 = sadd.s32 %s268, %s269
          %s271 = smul.addr %s270, 8
          %s272 = scalar_lea.vmem %s3, %s271
        $region28: #{tpu_custom_call.1} parent=15 // pred_fallthru
          _
        // Predicated region
        $region29: #{tpu_custom_call.1} parent=15 // pred_check
          %p273 = pneg %p143
        $region30: #{tpu_custom_call.1} parent=15 // pred_check_branch
          %275 = sbr.rel (%p273) target = $region32
        $region31: #{tpu_custom_call.1} parent=15 // pred_region
          %p276 = scmp.lt.s32.totalorder %s30, 3
          %s277 = scalar_select %p276, %s30, 3
          %p278 = scmp.lt.s32.totalorder %s31, 0
          %s279 = scalar_select %p278, %s31, 0
          %s280 = sadd.s32 %s279, %s277
          %s281 = scalar_lea.vmem %s4, %s280
        $region32: #{tpu_custom_call.1} parent=15 // pred_fallthru
          _
        // Predicated region
        $region33: #{tpu_custom_call.1} parent=15 // pred_check
          %p282 = pneg %p171
        $region34: #{tpu_custom_call.1} parent=15 // pred_check_branch
          %284 = sbr.rel (%p282) target = $region36
        $region35: #{tpu_custom_call.1} parent=15 // pred_region
          %s285 = smul.u32 8, %s31
          %p286 = scmp.lt.s32.totalorder %s30, 3
          %s287 = scalar_select %p286, %s30, 3
          %p288 = scmp.lt.s32.totalorder %s285, 7
          %s289 = scalar_select %p288, %s285, 7
          %s290 = smul.addr %s287, 8
          %s291 = sadd.s32 %s289, %s290
          %s292 = smul.addr %s291, 8
          %s293 = scalar_lea.vmem %s5, %s292
          %s294 = smul.u32 8, %s31
        $region36: #{tpu_custom_call.1} parent=15 // pred_fallthru
          _
        // Predicated region
        $region37: #{tpu_custom_call.1} parent=15 // pred_check
          %p295 = pneg %p197
        $region38: #{tpu_custom_call.1} parent=15 // pred_check_branch
          %297 = sbr.rel (%p295) target = $region40
        $region39: #{tpu_custom_call.1} parent=15 // pred_region
          %p298 = scmp.lt.s32.totalorder %s30, 3
          %s299 = scalar_select %p298, %s30, 3
          %s300 = scalar_lea.vmem %s6, %s299
        $region40: #{tpu_custom_call.1} parent=15 // pred_fallthru
          _
      $region16: #{tpu_custom_call.1} parent=5 // pred_fallthru
        _
      %p301 = scmp.le.s32.totalorder 1, %s22
      %p302 = scmp.lt.s32.totalorder %s22, 9
      %p303 = pnand %p301, %p302
      %p304 = pneg %p303
      // Predicated region
      $region41: #{tpu_custom_call.1} parent=5 // pred_check
        _
      $region42: #{tpu_custom_call.1} parent=5 // pred_check_branch
        %306 = sbr.rel (%p303) target = $region44
      $region43: #{tpu_custom_call.1} parent=5 // pred_region
        %s307 = ssub.s32 %s22, 1
        %p308 = scmp.lt.s32.totalorder %s32, 1
        %s309 = scalar_select %p308, %s32, 1
        %s310 = smul.addr %s309, 8
        %s311 = scalar_lea.vmem %s1, %s310
        %p312 = pneg %p67
        %p313 = pneg %p64
        %p314 = scmp.lt.s32.totalorder %s32, 1
        %s315 = scalar_select %p314, %s32, 1
        %s316 = smul.addr %s315, 8
        %s317 = scalar_lea.vmem %s2, %s316
        %p318 = pneg %p93
        %p319 = pneg %p90
        %p320 = scmp.lt.s32.totalorder %s33, 3
        %s321 = scalar_select %p320, %s33, 3
        %p322 = scmp.lt.s32.totalorder %s34, 0
        %s323 = scalar_select %p322, %s34, 0
        %s324 = smul.addr %s321, 4
        %s325 = sadd.s32 %s323, %s324
        %s326 = smul.addr %s325, 8
        %s327 = scalar_lea.vmem %s3, %s326
        %p328 = pneg %p121
        %p329 = pneg %p118
        %p330 = scmp.lt.s32.totalorder %s33, 3
        %s331 = scalar_select %p330, %s33, 3
        %p332 = scmp.lt.s32.totalorder %s34, 0
        %s333 = scalar_select %p332, %s34, 0
        %s334 = sadd.s32 %s333, %s331
        %s335 = scalar_lea.vmem %s4, %s334
        %p336 = pneg %p149
        %p337 = pneg %p146
        %s338 = smul.u32 8, %s34
        %p339 = scmp.lt.s32.totalorder %s33, 3
        %s340 = scalar_select %p339, %s33, 3
        %p341 = scmp.lt.s32.totalorder %s338, 7
        %s342 = scalar_select %p341, %s338, 7
        %s343 = smul.addr %s340, 8
        %s344 = sadd.s32 %s342, %s343
        %s345 = smul.addr %s344, 8
        %s346 = scalar_lea.vmem %s5, %s345
        %p347 = pneg %p177
        %p348 = pneg %p174
        %p349 = scmp.lt.s32.totalorder %s33, 3
        %s350 = scalar_select %p349, %s33, 3
        %s351 = scalar_lea.vmem %s6, %s350
        %p352 = pneg %p203
        %p353 = pneg %p200
        %p354 = pneg %p229
        %p355 = pneg %p226
        %s356 = sand.u32 %s216, 1
        %s357 = scalar_lea.sflag [#allocation5], %s356
        %s358 = sand.u32 %s216, 1
        %s359 = smul.addr %s358, 8
        %s360 = scalar_lea.vmem [#allocation4], %s359
        %p361 = scmp.lt.s32.totalorder %s32, 1
        %s362 = scalar_select %p361, %s32, 1
        %s363 = smul.addr %s362, 8
        %s364 = scalar_lea.vmem %s1, %s363
        %p365 = scmp.lt.s32.totalorder %s32, 1
        %s366 = scalar_select %p365, %s32, 1
        %s367 = smul.addr %s366, 8
        %s368 = scalar_lea.vmem %s2, %s367
        %p369 = scmp.lt.s32.totalorder %s33, 3
        %s370 = scalar_select %p369, %s33, 3
        %p371 = scmp.lt.s32.totalorder %s34, 0
        %s372 = scalar_select %p371, %s34, 0
        %s373 = smul.addr %s370, 4
        %s374 = sadd.s32 %s372, %s373
        %s375 = smul.addr %s374, 8
        %s376 = scalar_lea.vmem %s3, %s375
        %p377 = scmp.lt.s32.totalorder %s33, 3
        %s378 = scalar_select %p377, %s33, 3
        %p379 = scmp.lt.s32.totalorder %s34, 0
        %s380 = scalar_select %p379, %s34, 0
        %s381 = sadd.s32 %s380, %s378
        %s382 = scalar_lea.vmem %s4, %s381
        %s383 = smul.u32 8, %s34
        %p384 = scmp.lt.s32.totalorder %s33, 3
        %s385 = scalar_select %p384, %s33, 3
        %p386 = scmp.lt.s32.totalorder %s383, 7
        %s387 = scalar_select %p386, %s383, 7
        %s388 = smul.addr %s385, 8
        %s389 = sadd.s32 %s387, %s388
        %s390 = smul.addr %s389, 8
        %s391 = scalar_lea.vmem %s5, %s390
        %s392 = smul.u32 8, %s34
        %p393 = scmp.lt.s32.totalorder %s33, 3
        %s394 = scalar_select %p393, %s33, 3
        %s395 = scalar_lea.vmem %s6, %s394
        %p396 = scmp.eq.s32.totalorder %s33, 0
        %p397 = scmp.eq.s32.totalorder %s34, 0
        %p398 = pnand %p396, %p397
        %p399 = pneg %p398
        // Predicated region
        $region45: #{tpu_custom_call.1} parent=43 // pred_check
          _
        $region46: #{tpu_custom_call.1} parent=43 // pred_check_branch
          %401 = sbr.rel (%p398) target = $region48
        $region47: #{tpu_custom_call.1} parent=43 // pred_region
          %vm402 = vcmask 261120
          %403 = vst.msk [vmem:[%s360] sm:$0xff] %vm402, 0.0
        $region48: #{tpu_custom_call.1} parent=43 // pred_fallthru
          _
        %s404 = smul.u32 %s32, 4
        %s405 = sadd.s32 %s404, %s33
        %s406 = sld [smem:[#allocation3 + %s405]]
        %p407 = scmp.gt.s32.totalorder %s406, 0
        // Predicated region
        $region49: #{tpu_custom_call.1} parent=43 // pred_check
          %p408 = pneg %p407
        $region50: #{tpu_custom_call.1} parent=43 // pred_check_branch
          %410 = sbr.rel (%p408) target = $region52
        $region51: #{tpu_custom_call.1} parent=43 // pred_region
          %v411 = vlaneseq
          %v412 = vand.u32 %v411, 127
          %v413 = vstv %s33
          %vm414 = vcmp.eq.s32.totalorder %v412, %v413
          %v415 = vld [vmem:[%s368] sm:$0xff]
          %v416 = vsel %vm414, %v415, 0.0
          %vm417 = vcmask 31744
          %v418 = vsel %vm417, %v416, 0.0
          %419 = vadd.xlane.f32.xlu0 %v418
          %v420 = vpop.xlane.xlu0 %419
          %v421 = vld [vmem:[%s364] sm:$0xff]
          %v422 = vld [vmem:[%s376] sm:$0xff]
          %v423 = vld [vmem:[%s376 + $0x8] sm:$0xff]
          %v424 = vld [vmem:[%s376 + $0x10] sm:$0xff]
          %v425 = vld [vmem:[%s376 + $0x18] sm:$0xff]
          %v426 = vld [vmem:[%s382] sm:$0x1]
          %v428 = vlaneseq
          %v429 = vshrl.u32 %v428, 7
          %v430 = vsub.s32 0, %v429
          %v431 = vrot.slane %v426, %v430
          %vm433 = vcmask 261120
          %v435 = vsel %vm433, %v421, 0
          %437 = vmatprep.subr.mxu0 0.0
          %438 = vmatpush1.msra.mxu0 %v422
          %439 = vmatprep.subr.mxu0 0.0
          %440 = vmatpush1.msra.mxu0 %v423
          %441 = vmatprep.subr.mxu0 0.0
          %442 = vmatpush1.msra.mxu0 %v424
          %443 = vmatprep.subr.mxu0 0.0
          %444 = vmatpush1.msra.mxu0 %v425
          %445 = vmatprep.subr.mxu0 0.0
          %446 = vmatpush1.msra.mxu0 0.0
          %447 = vmatprep.subr.mxu0 0.0
          %448 = vmatpush1.msra.mxu0 0.0
          %449 = vmatprep.subr.mxu0 0.0
          %450 = vmatpush1.msra.mxu0 0.0
          %451 = vmatprep.subr.mxu0 0.0
          %452 = vmatpush1.msra.mxu0 0.0
          %453 = vmatprep.subr.mxu0 0.0
          %454 = vmatpush1.msra.mxu0 0.0
          %455 = vmatprep.subr.mxu0 0.0
          %456 = vmatpush1.msra.mxu0 0.0
          %457 = vmatprep.subr.mxu0 0.0
          %458 = vmatpush1.msra.mxu0 0.0
          %459 = vmatprep.subr.mxu0 0.0
          %460 = vmatpush1.msra.mxu0 0.0
          %461 = vmatprep.subr.mxu0 0.0
          %462 = vmatpush1.msra.mxu0 0.0
          %463 = vmatprep.subr.mxu0 0.0
          %464 = vmatpush1.msra.mxu0 0.0
          %465 = vmatprep.subr.mxu0 0.0
          %466 = vmatpush1.msra.mxu0 0.0
          %467 = vmatprep.subr.mxu0 0.0
          %468 = vmatpush1.msra.mxu0 0.0
          %469 = vmatprep.subr.mxu0 0.0
          %470 = vmatpush1.msra.mxu0 0.0
          %471 = vmatprep.subr.mxu0 0.0
          %472 = vmatpush1.msra.mxu0 0.0
          %473 = vmatprep.subr.mxu0 0.0
          %474 = vmatpush1.msra.mxu0 0.0
          %475 = vmatprep.subr.mxu0 0.0
          %476 = vmatpush1.msra.mxu0 0.0
          %477 = vmatprep.subr.mxu0 0.0
          %478 = vmatpush1.msra.mxu0 0.0
          %479 = vmatprep.subr.mxu0 0.0
          %480 = vmatpush1.msra.mxu0 0.0
          %481 = vmatprep.subr.mxu0 0.0
          %482 = vmatpush1.msra.mxu0 0.0
          %483 = vmatprep.subr.mxu0 0.0
          %484 = vmatpush1.msra.mxu0 0.0
          %485 = vmatprep.subr.mxu0 0.0
          %486 = vmatpush1.msra.mxu0 0.0
          %487 = vmatprep.subr.mxu0 0.0
          %488 = vmatpush1.msra.mxu0 0.0
          %489 = vmatprep.subr.mxu0 0.0
          %490 = vmatpush1.msra.mxu0 0.0
          %491 = vmatprep.subr.mxu0 0.0
          %492 = vmatpush1.msra.mxu0 0.0
          %493 = vmatprep.subr.mxu0 0.0
          %494 = vmatpush1.msra.mxu0 0.0
          %495 = vmatprep.subr.mxu0 0.0
          %496 = vmatpush1.msra.mxu0 0.0
          %497 = vmatprep.subr.mxu0 0.0
          %498 = vmatpush1.msra.mxu0 0.0
          %499 = vmatprep.subr.mxu0 0.0
          %500 = vmatpush1.msra.mxu0 0.0
          %501 = vmatprep.mubr.f32.mxu0 0.0
          %502 = vmatmul.mubr.f32.gmra.mrb[0].mxu0 %v435
          %v503 = vpop.f32.mrb[0].mxu0
          %v504 = vadd.f32 %v431, %v503
          %v505 = vpop.f32.mrb[0].mxu0
          %506 = vdwg.mxu0
          %v507 = vmul.f32 %v504, %v504
          %v508 = vmul.f32 %v504, %v507
          %v509 = vmul.f32 %v508, 0.044715
          %v510 = vadd.f32 %v504, %v509
          %v511 = vmul.f32 %v510, 0.7978846
          %v512 = vtanh.pop %v511
          %v513 = vadd.f32 %v512, 1.0
          %v514 = vmul.f32 %v513, 0.5
          %v515 = vmul.f32 %v504, %v514
          %v516 = vld [vmem:[%s391] sm:$0xff]
          %v517 = vld [vmem:[%s391 + $0x8] sm:$0xff]
          %v518 = vld [vmem:[%s391 + $0x10] sm:$0xff]
          %v519 = vld [vmem:[%s391 + $0x18] sm:$0xff]
          %v520 = vld [vmem:[%s391 + $0x20] sm:$0xff]
          %v521 = vld [vmem:[%s391 + $0x28] sm:$0xff]
          %v522 = vld [vmem:[%s391 + $0x30] sm:$0xff]
          %v523 = vld [vmem:[%s391 + $0x38] sm:$0xff]
          %s524 = scalar_select %p397, 1.0, 0.0
          %v525 = vld [vmem:[%s395] sm:$0x1]
          %v526 = vstv %s524
          %v527 = vmul.f32 %v526, %v525
          %v529 = vlaneseq
          %v530 = vshrl.u32 %v529, 7
          %v531 = vsub.s32 0, %v530
          %v532 = vrot.slane %v527, %v531
          %vm534 = vcmask 523264
          %v536 = vsel %vm534, %v515, 0
          %538 = vmatprep.subr.mxu0 0.0
          %539 = vmatpush1.msra.mxu0 %v516
          %540 = vmatprep.subr.mxu0 0.0
          %541 = vmatpush1.msra.mxu0 %v517
          %542 = vmatprep.subr.mxu0 0.0
          %543 = vmatpush1.msra.mxu0 %v518
          %544 = vmatprep.subr.mxu0 0.0
          %545 = vmatpush1.msra.mxu0 %v519
          %546 = vmatprep.subr.mxu0 0.0
          %547 = vmatpush1.msra.mxu0 %v520
          %548 = vmatprep.subr.mxu0 0.0
          %549 = vmatpush1.msra.mxu0 %v521
          %550 = vmatprep.subr.mxu0 0.0
          %551 = vmatpush1.msra.mxu0 %v522
          %552 = vmatprep.subr.mxu0 0.0
          %553 = vmatpush1.msra.mxu0 %v523
          %554 = vmatprep.subr.mxu0 0.0
          %555 = vmatpush1.msra.mxu0 0.0
          %556 = vmatprep.subr.mxu0 0.0
          %557 = vmatpush1.msra.mxu0 0.0
          %558 = vmatprep.subr.mxu0 0.0
          %559 = vmatpush1.msra.mxu0 0.0
          %560 = vmatprep.subr.mxu0 0.0
          %561 = vmatpush1.msra.mxu0 0.0
          %562 = vmatprep.subr.mxu0 0.0
          %563 = vmatpush1.msra.mxu0 0.0
          %564 = vmatprep.subr.mxu0 0.0
          %565 = vmatpush1.msra.mxu0 0.0
          %566 = vmatprep.subr.mxu0 0.0
          %567 = vmatpush1.msra.mxu0 0.0
          %568 = vmatprep.subr.mxu0 0.0
          %569 = vmatpush1.msra.mxu0 0.0
          %570 = vmatprep.subr.mxu0 0.0
          %571 = vmatpush1.msra.mxu0 0.0
          %572 = vmatprep.subr.mxu0 0.0
          %573 = vmatpush1.msra.mxu0 0.0
          %574 = vmatprep.subr.mxu0 0.0
          %575 = vmatpush1.msra.mxu0 0.0
          %576 = vmatprep.subr.mxu0 0.0
          %577 = vmatpush1.msra.mxu0 0.0
          %578 = vmatprep.subr.mxu0 0.0
          %579 = vmatpush1.msra.mxu0 0.0
          %580 = vmatprep.subr.mxu0 0.0
          %581 = vmatpush1.msra.mxu0 0.0
          %582 = vmatprep.subr.mxu0 0.0
          %583 = vmatpush1.msra.mxu0 0.0
          %584 = vmatprep.subr.mxu0 0.0
          %585 = vmatpush1.msra.mxu0 0.0
          %586 = vmatprep.subr.mxu0 0.0
          %587 = vmatpush1.msra.mxu0 0.0
          %588 = vmatprep.subr.mxu0 0.0
          %589 = vmatpush1.msra.mxu0 0.0
          %590 = vmatprep.subr.mxu0 0.0
          %591 = vmatpush1.msra.mxu0 0.0
          %592 = vmatprep.subr.mxu0 0.0
          %593 = vmatpush1.msra.mxu0 0.0
          %594 = vmatprep.subr.mxu0 0.0
          %595 = vmatpush1.msra.mxu0 0.0
          %596 = vmatprep.subr.mxu0 0.0
          %597 = vmatpush1.msra.mxu0 0.0
          %598 = vmatprep.subr.mxu0 0.0
          %599 = vmatpush1.msra.mxu0 0.0
          %600 = vmatprep.subr.mxu0 0.0
          %601 = vmatpush1.msra.mxu0 0.0
          %602 = vmatprep.mubr.f32.mxu0 0.0
          %603 = vmatmul.mubr.f32.gmra.mrb[0].mxu0 %v536
          %v604 = vpop.f32.mrb[0].mxu0
          %v605 = vadd.f32 %v532, %v604
          %v606 = vpop.f32.mrb[0].mxu0
          %607 = vdwg.mxu0
          %v608 = vld [vmem:[%s360] sm:$0xff]
          %v609 = vmul.f32 %v420, %v605
          %v610 = vadd.f32 %v608, %v609
          %611 = vst.msk [vmem:[%s360] sm:$0xff] %vm433, %v610
        $region52: #{tpu_custom_call.1} parent=43 // pred_fallthru
          _
        %s612 = sand.u32 %s216, 1
        %s613 = scalar_lea.sflag [#allocation5], %s612
        %s614 = sand.u32 %s216, 1
        %s615 = smul.addr %s614, 8
        %s616 = scalar_lea.vmem [#allocation4], %s615
        // Predicated region
        $region53: #{tpu_custom_call.1} parent=43 // pred_check
          %p617 = pneg %p226
        $region54: #{tpu_custom_call.1} parent=43 // pred_check_branch
          %619 = sbr.rel (%p617) target = $region56
        $region55: #{tpu_custom_call.1} parent=43 // pred_region
          %s621 = ssub.s32 128, 128
          %622 = vsyncadd %s613, %s621
          %s623 = smul.addr %s32, 128
          %s624 = scalar_lea.hbm %s7, %s623
          %s626 = sshll.u32 %s616, 4
          %s627 = int_to_ptr.vmem [resolvable:$true] %s626
          %629 = dma.vmem_to_hbm [thread:$0]  %s627, 128, %s624, %s613
        $region56: #{tpu_custom_call.1} parent=43 // pred_fallthru
          _
      $region44: #{tpu_custom_call.1} parent=5 // pred_fallthru
        _
      %p630 = scmp.le.s32.totalorder 2, %s22
      // Predicated region
      $region57: #{tpu_custom_call.1} parent=5 // pred_check
        %p631 = pneg %p630
      $region58: #{tpu_custom_call.1} parent=5 // pred_check_branch
        %633 = sbr.rel (%p631) target = $region60
      $region59: #{tpu_custom_call.1} parent=5 // pred_region
        %s634 = ssub.s32 %s22, 2
        // Predicated region
        $region61: #{tpu_custom_call.1} parent=59 // pred_check
          %p635 = pneg %p232
        $region62: #{tpu_custom_call.1} parent=59 // pred_check_branch
          %637 = sbr.rel (%p635) target = $region64
        $region63: #{tpu_custom_call.1} parent=59 // pred_region
          %s638 = sand.u32 %s217, 1
          %s639 = scalar_lea.sflag [#allocation5], %s638
          %s640 = sand.u32 %s217, 1
          %s641 = smul.addr %s640, 8
          %s642 = scalar_lea.vmem [#allocation4], %s641
          %643 = dma.done %s639, 128
        $region64: #{tpu_custom_call.1} parent=59 // pred_fallthru
          _
      $region60: #{tpu_custom_call.1} parent=5 // pred_fallthru
        _
    $region6: #{tpu_custom_call.1} parent=1 // loop_footer
      %s26 = sadd.s32 1, %s22
    $region7: #{tpu_custom_call.1} parent=1 // loop_footer_branch
      %21 = sbr.rel target = $region3
    $region8: #{tpu_custom_call.1} parent=1 // loop_exit
      _
    %644 = vsyncpa [#allocation5], 1
    %s645 = scalar_lea.sflag [#allocation5], 1
    %646 = vsyncpa %s645, 1

</llo_original>
